<compile_context>
chip_gen: v7x
topology: tpu7x:2x2x1
jax: 0.10.0
libtpu: 0.0.40
codegen_flags: <defaults>
</compile_context>

<pallas_src>
import functools

import jax
import jax.numpy as jnp
from jax.experimental import pallas as pl
from jax.experimental.pallas import tpu as pltpu


def _round_up(n, m):
    return ((n + m - 1) // m) * m


def _pack_params(params, compute_dtype):
    """Pack [(W, b), ...] (W: (d_in, d_out)) into two slabs + static metadata.

    * w_slab (compute_dtype): per layer, W^T (d_out, d_in) at an 8-aligned row
      offset, zero-padded to a common 128-multiple width.  Padding never
      enters a contraction: the kernel slices exact (d_out, d_in) views.
    * b_slab (float32, always): per layer, the bias as a (d_out, 1) column at
      the same 8-aligned row offset, so bias-add broadcasts along lanes in f32.
    """
    width = _round_up(max(w.shape[0] for w, _ in params), 128)
    w_rows, b_rows, meta = [], [], []
    off = 0
    n_layers = len(params)
    for li, (w, b) in enumerate(params):
        d_in, d_out = w.shape
        rows = _round_up(d_out, 8)
        wt = jnp.zeros((rows, width), jnp.float32)
        wt = wt.at[:d_out, :d_in].set(jnp.asarray(w, jnp.float32).T)
        bc = jnp.zeros((rows, 1), jnp.float32)
        bc = bc.at[:d_out, 0].set(jnp.reshape(jnp.asarray(b, jnp.float32), (d_out,)))
        w_rows.append(wt)
        b_rows.append(bc)
        meta.append((li < n_layers - 1, off, d_in, d_out))
        off += rows
    w_slab = jnp.concatenate(w_rows, axis=0).astype(compute_dtype)
    b_slab = jnp.concatenate(b_rows, axis=0)            # stays float32
    return w_slab, b_slab, tuple(meta)


def _mlp_kernel(x_ref, w_ref, b_ref, out_ref, *, layer_meta, compute_dtype):
    """One batch tile, feature-major: activations are (d, TB), batch on lanes."""
    h = x_ref[...]                                       # (state_dim, TB) f32
    for is_hidden, off, d_in, d_out in layer_meta:
        w = w_ref[off:off + d_out, 0:d_in]               # (d_out, d_in) compute_dtype
        b = b_ref[off:off + d_out, 0:1]                  # (d_out, 1)    f32
        y = jnp.dot(w, h.astype(compute_dtype),
                    preferred_element_type=jnp.float32) + b
        if is_hidden:
            h = jnp.maximum(y, 0.0)                      # (d_out, TB) f32
        else:
            out_ref[...] = y.astype(out_ref.dtype)       # lane-dense (1, TB)


def value_net_forward(x, params, *, block_batch=2048, compute_dtype=jnp.float32,
                      min_tiles=1):
    """valueNet forward pass.

    params: [(W, b), ...] with W shaped (in, out), b shaped (1, out); the last
    entry is the head (out == 1).  Returns (batch, 1) float32.

    block_batch : batch-tile size, forced to a multiple of 128. 2048-8192
                  amortizes per-grid-step overhead (fits VMEM easily even on
                  v7x's 64 MiB).
    compute_dtype: float32 (default; keep this on v5e) or bfloat16 (MXU-input
                  option on v6e/v7x; accumulation/bias/ReLU stay f32).
    min_tiles   : set to 2 on v7x so the "parallel" batch axis can actually
                  split across its two TensorCores at production batch sizes.
    """
    batch, state_dim = x.shape
    w_slab, b_slab, layer_meta = _pack_params(params, compute_dtype)

    tb = min(int(block_batch), _round_up(batch, 128))
    if min_tiles > 1:
        tb = min(tb, _round_up(-(-batch // min_tiles), 128))
    tb = max(128, _round_up(tb, 128))
    num_tiles = -(-batch // tb)
    b_pad = num_tiles * tb

    # Feature-major input: (state_dim, B_pad).  Rows are contiguous in HBM, so
    # each (state_dim, tb) block is a dense, unstrided DMA.
    xt = jnp.asarray(x, jnp.float32).T
    if b_pad != batch:
        xt = jnp.pad(xt, ((0, 0), (0, b_pad - batch)))

    kernel = functools.partial(_mlp_kernel, layer_meta=layer_meta,
                               compute_dtype=compute_dtype)

    out = pl.pallas_call(
        kernel,
        out_shape=jax.ShapeDtypeStruct((1, b_pad), jnp.float32),
        grid=(num_tiles,),
        in_specs=[
            pl.BlockSpec((state_dim, tb), lambda i: (0, i)),   # batch-tiled x
            pl.BlockSpec(w_slab.shape, lambda i: (0, 0)),      # resident W^T slab
            pl.BlockSpec(b_slab.shape, lambda i: (0, 0)),      # resident f32 biases
        ],
        out_specs=pl.BlockSpec((1, tb), lambda i: (0, i)),     # lane-dense output
        compiler_params=pltpu.CompilerParams(
            dimension_semantics=("parallel",)),
    )(xt, w_slab, b_slab)

    return jnp.reshape(out[:, :batch], (batch, 1))


def init_value_net_params(key, state_dim, hidden_layers_dim):
    """Mimics PyTorch nn.Linear default init: U(-1/sqrt(fan_in), 1/sqrt(fan_in))."""
    dims = [state_dim] + list(hidden_layers_dim) + [1]
    params = []
    for i in range(len(dims) - 1):
        fan_in, fan_out = dims[i], dims[i + 1]
        key, kw, kb = jax.random.split(key, 3)
        bound = 1.0 / jnp.sqrt(jnp.float32(fan_in))
        # Stored in (in, out) layout (== transpose of PyTorch's (out, in)).
        w = jax.random.uniform(kw, (fan_in, fan_out), jnp.float32, -bound, bound)
        b = jax.random.uniform(kb, (1, fan_out), jnp.float32, -bound, bound)
        params.append((w, b))
    return params


def value_net_ref(x, params):
    """Pure-JAX reference of the same forward pass."""
    h = x
    for i, (w, b) in enumerate(params):
        h = h @ w + b
        if i < len(params) - 1:
            h = jnp.maximum(h, 0.0)
    return h


if __name__ == "__main__":
    # Pendulum-v1: state_dim = 3; small hidden layers.
    state_dim = 3
    hidden_layers_dim = [32, 32]

    key = jax.random.PRNGKey(0)
    key, kx = jax.random.split(key)
    params = init_value_net_params(key, state_dim, hidden_layers_dim)

    # Small single-tile test (tb is padded up to 128).
    x_small = jax.random.normal(kx, (8, state_dim), jnp.float32)
    out = jax.block_until_ready(value_net_forward(x_small, params))
    ref = value_net_ref(x_small, params)
    assert out.shape == (8, 1), out.shape
    assert jnp.allclose(out, ref, atol=2e-5, rtol=2e-5)

    # Multi-tile test: exercises the batch grid, 128-multiple tiles and padding.
    key, kx2 = jax.random.split(key)
    x_big = jax.random.normal(kx2, (300, state_dim), jnp.float32)
    out_b = jax.block_until_ready(value_net_forward(x_big, params, block_batch=256))
    ref_b = value_net_ref(x_big, params)
    assert out_b.shape == (300, 1), out_b.shape
    assert jnp.allclose(out_b, ref_b, atol=2e-5, rtol=2e-5)

    # v7x-style selection: guarantee >= 2 grid steps so both TensorCores engage.
    out_m = jax.block_until_ready(value_net_forward(x_big, params, min_tiles=2))
    assert jnp.allclose(out_m, ref_b, atol=2e-5, rtol=2e-5)

    # bf16 MXU-input path (v6e/v7x option); biases/accumulation stay f32,
    # tolerance loosened by design.
    out_bf16 = jax.block_until_ready(
        value_net_forward(x_big, params, block_batch=256,
                          compute_dtype=jnp.bfloat16))
    assert jnp.allclose(out_bf16, ref_b, atol=1e-1, rtol=1e-1)

    print("KERNEL_OK")
</pallas_src>

<mosaic_0001>
module attributes {stable_mosaic.version = 11 : i64} {
  func.func @_mlp_kernel(%arg0: i32, %arg1: memref<3x128xf32, #tpu.memory_space<vmem>>, %arg2: memref<72x128xf32, #tpu.memory_space<vmem>>, %arg3: memref<72x1xf32, #tpu.memory_space<vmem>>, %arg4: memref<1x128xf32, #tpu.memory_space<vmem>>) attributes {dimension_semantics = [#tpu.dimension_semantics<parallel>], iteration_bounds = array<i64: 1>, scalar_prefetch = 0 : i64, scratch_operands = 0 : i64, tpu.core_type = #tpu.core_type<tc>, window_params = [{transform_indices = @transform_0, window_bounds = array<i64: 3, 128>}, {pipeline_mode = #tpu.pipeline_mode<synchronous>, transform_indices = @transform_1, window_bounds = array<i64: 72, 128>}, {pipeline_mode = #tpu.pipeline_mode<synchronous>, transform_indices = @transform_2, window_bounds = array<i64: 72, 1>}, {transform_indices = @transform_3, window_bounds = array<i64: 1, 128>}]} {
    %c0 = arith.constant 0 : index
    %c0_0 = arith.constant 0 : index
    %0 = vector.load %arg1[%c0, %c0_0] : memref<3x128xf32, #tpu.memory_space<vmem>>, vector<3x128xf32>
    %c0_1 = arith.constant 0 : index
    %c0_2 = arith.constant 0 : index
    %1 = vector.load %arg2[%c0_1, %c0_2] : memref<72x128xf32, #tpu.memory_space<vmem>>, vector<32x3xf32>
    %c0_3 = arith.constant 0 : index
    %c0_4 = arith.constant 0 : index
    %2 = vector.load %arg3[%c0_3, %c0_4] : memref<72x1xf32, #tpu.memory_space<vmem>>, vector<32x1xf32>
    %cst = arith.constant dense<0.000000e+00> : vector<32x128xf32>
    %3 = tpu.matmul %1, %0, %cst {dimension_numbers = #tpu.dot_dimension_numbers<[1], [0], [0], [1], [0, 0, 1, 1], [], []>} : vector<32x3xf32>, vector<3x128xf32>, vector<32x128xf32> -> vector<32x128xf32>
    %4 = vector.broadcast %2 : vector<32x1xf32> to vector<32x128xf32>
    %5 = arith.addf %3, %4 : vector<32x128xf32>
    %cst_5 = arith.constant 0.000000e+00 : f32
    %6 = vector.broadcast %cst_5 : f32 to vector<32x128xf32>
    %7 = arith.maximumf %5, %6 : vector<32x128xf32>
    %c32 = arith.constant 32 : index
    %c0_6 = arith.constant 0 : index
    %8 = vector.load %arg2[%c32, %c0_6] : memref<72x128xf32, #tpu.memory_space<vmem>>, vector<32x32xf32>
    %c32_7 = arith.constant 32 : index
    %c0_8 = arith.constant 0 : index
    %9 = vector.load %arg3[%c32_7, %c0_8] : memref<72x1xf32, #tpu.memory_space<vmem>>, vector<32x1xf32>
    %cst_9 = arith.constant dense<0.000000e+00> : vector<32x128xf32>
    %10 = tpu.matmul %8, %7, %cst_9 {dimension_numbers = #tpu.dot_dimension_numbers<[1], [0], [0], [1], [0, 0, 1, 1], [], []>} : vector<32x32xf32>, vector<32x128xf32>, vector<32x128xf32> -> vector<32x128xf32>
    %11 = vector.broadcast %9 : vector<32x1xf32> to vector<32x128xf32>
    %12 = arith.addf %10, %11 : vector<32x128xf32>
    %cst_10 = arith.constant 0.000000e+00 : f32
    %13 = vector.broadcast %cst_10 : f32 to vector<32x128xf32>
    %14 = arith.maximumf %12, %13 : vector<32x128xf32>
    %c64 = arith.constant 64 : index
    %c0_11 = arith.constant 0 : index
    %15 = vector.load %arg2[%c64, %c0_11] : memref<72x128xf32, #tpu.memory_space<vmem>>, vector<1x32xf32>
    %c64_12 = arith.constant 64 : index
    %c0_13 = arith.constant 0 : index
    %16 = vector.load %arg3[%c64_12, %c0_13] : memref<72x1xf32, #tpu.memory_space<vmem>>, vector<1x1xf32>
    %cst_14 = arith.constant dense<0.000000e+00> : vector<1x128xf32>
    %17 = tpu.matmul %15, %14, %cst_14 {dimension_numbers = #tpu.dot_dimension_numbers<[1], [0], [0], [1], [0, 0, 1, 1], [], []>} : vector<1x32xf32>, vector<32x128xf32>, vector<1x128xf32> -> vector<1x128xf32>
    %18 = vector.broadcast %16 : vector<1x1xf32> to vector<1x128xf32>
    %19 = arith.addf %17, %18 : vector<1x128xf32>
    %c0_15 = arith.constant 0 : index
    %c0_16 = arith.constant 0 : index
    %20 = vector.load %arg4[%c0_15, %c0_16] : memref<1x128xf32, #tpu.memory_space<vmem>>, vector<1x128xf32>
    tpu.vector_store %arg4[%c0_15, %c0_16], %19 {strides = array<i32>} : memref<1x128xf32, #tpu.memory_space<vmem>>, vector<1x128xf32>,
    return
  }
  func.func @transform_0(%arg0: i32) -> (i32, i32) {
    %c0_i32 = arith.constant 0 : i32
    %c0_i32_0 = arith.constant 0 : i32
    return %c0_i32, %arg0 : i32, i32
  }
  func.func @transform_1(%arg0: i32) -> (i32, i32) {
    %c0_i32 = arith.constant 0 : i32
    %c0_i32_0 = arith.constant 0 : i32
    %c0_i32_1 = arith.constant 0 : i32
    return %c0_i32, %c0_i32_0 : i32, i32
  }
  func.func @transform_2(%arg0: i32) -> (i32, i32) {
    %c0_i32 = arith.constant 0 : i32
    %c0_i32_0 = arith.constant 0 : i32
    %c0_i32_1 = arith.constant 0 : i32
    return %c0_i32, %c0_i32_0 : i32, i32
  }
  func.func @transform_3(%arg0: i32) -> (i32, i32) {
    %c0_i32 = arith.constant 0 : i32
    %c0_i32_0 = arith.constant 0 : i32
    return %c0_i32, %arg0 : i32, i32
  }
}

</mosaic_0001>

<llo_original>
// kernel: tpu_custom_call.1
$region0: #{tpu_custom_call.1}
  #allocation0 [shape = 'u32[]', space=smem, size = 0x4, offset = 0x4, fixed_abs, tag = 'smem constant byte address 0x4 - core index']
  #allocation1 [shape = 'u32[144,128]{1,0:T(1,128)}', space=vmem, size = 0x12000, scoped, tag = 'internal scratch']
  %s0 = inlined_call_operand.vmem [shape: f32[3,128], index: 0, kind: input, shape index: {}]
  %s1 = inlined_call_operand.vmem [shape: f32[72,128], index: 1, kind: input, shape index: {}]
  %s2 = inlined_call_operand.vmem [shape: f32[72,1], index: 2, kind: input, shape index: {}]
  %s3 = inlined_call_operand.hbm [shape: f32[1,128], index: 3, kind: output, shape index: {}]
  %s4 = sld [smem:[#allocation0]]
  $region22: #{tpu_custom_call.1} parent=0
    _
  %s6 = ssub.s32 1, %s4
  %s7 = scalar_select 0, %s6, %s4
  $region1: #{tpu_custom_call.1} parent=0
    #allocation2 [shape = 'u8[512]{0}', space=vmem, size = 0x400, scoped, tag = 'output window, operand 0, single buffered']
    #allocation3 [shape = 's32[1]{0}', space=sflag, size = 0x4, scoped, tag = 'scoped memory for tpu_custom_call.1']
    %8 = vsyncpa [#allocation3], 0
    // Predicated region
    $region2: #{tpu_custom_call.1} parent=1 // pred_check
      _
    $region3: #{tpu_custom_call.1} parent=1 // pred_check_branch
      %10 = sbr.rel (0) target = $region5
    $region4: #{tpu_custom_call.1} parent=1 // pred_region
      _
    $region5: #{tpu_custom_call.1} parent=1 // pred_fallthru
      _
    // Predicated region
    $region6: #{tpu_custom_call.1} parent=1 // pred_check
      _
    $region7: #{tpu_custom_call.1} parent=1 // pred_check_branch
      %12 = sbr.rel (0) target = $region9
    $region8: #{tpu_custom_call.1} parent=1 // pred_region
      _
    $region9: #{tpu_custom_call.1} parent=1 // pred_fallthru
      _
    // Predicated region
    $region10: #{tpu_custom_call.1} parent=1 // pred_check
      _
    $region11: #{tpu_custom_call.1} parent=1 // pred_check_branch
      %14 = sbr.rel (0) target = $region13
    $region12: #{tpu_custom_call.1} parent=1 // pred_region
      _
    $region13: #{tpu_custom_call.1} parent=1 // pred_fallthru
      _
    %v15 = vld [vmem:[%s0] sm:$0x7]
    %v16 = vld [vmem:[%s1] sm:$0xff]
    %v17 = vld [vmem:[%s1 + $0x8] sm:$0xff]
    %v18 = vld [vmem:[%s1 + $0x10] sm:$0xff]
    %v19 = vld [vmem:[%s1 + $0x18] sm:$0xff]
    %v20 = vld [vmem:[%s2] sm:$0xff]
    %v21 = vld [vmem:[%s2 + $0x8] sm:$0xff]
    %v22 = vld [vmem:[%s2 + $0x10] sm:$0xff]
    %v23 = vld [vmem:[%s2 + $0x18] sm:$0xff]
    %25 = vset.pattern.permute.xlu0 0
    %26 = vperm.xlu0 %25, %v20
    %v27 = vpop.permute.xlu0 %26
    %30 = vset.pattern.permute.xlu0 0
    %31 = vperm.xlu0 %30, %v21
    %v32 = vpop.permute.xlu0 %31
    %35 = vset.pattern.permute.xlu0 0
    %36 = vperm.xlu0 %35, %v22
    %v37 = vpop.permute.xlu0 %36
    %40 = vset.pattern.permute.xlu0 0
    %41 = vperm.xlu0 %40, %v23
    %v42 = vpop.permute.xlu0 %41
    %vm44 = vcmask 23552
    %v46 = vsel %vm44, %v16, 0
    %v49 = vsel %vm44, %v17, 0
    %v52 = vsel %vm44, %v18, 0
    %v55 = vsel %vm44, %v19, 0
    %vm57 = vcmask 1042432
    %v59 = vsel %vm57, %v15, 0
    %61 = vmatprep.subr.mxu0 0.0
    %62 = vmatpush1.msra.mxu0 %v59
    %63 = vmatprep.subr.mxu0 0.0
    %64 = vmatpush1.msra.mxu0 0.0
    %65 = vmatprep.subr.mxu0 0.0
    %66 = vmatpush1.msra.mxu0 0.0
    %67 = vmatprep.subr.mxu0 0.0
    %68 = vmatpush1.msra.mxu0 0.0
    %69 = vmatprep.subr.mxu0 0.0
    %70 = vmatpush1.msra.mxu0 0.0
    %71 = vmatprep.subr.mxu0 0.0
    %72 = vmatpush1.msra.mxu0 0.0
    %73 = vmatprep.subr.mxu0 0.0
    %74 = vmatpush1.msra.mxu0 0.0
    %75 = vmatprep.subr.mxu0 0.0
    %76 = vmatpush1.msra.mxu0 0.0
    %77 = vmatprep.subr.mxu0 0.0
    %78 = vmatpush1.msra.mxu0 0.0
    %79 = vmatprep.subr.mxu0 0.0
    %80 = vmatpush1.msra.mxu0 0.0
    %81 = vmatprep.subr.mxu0 0.0
    %82 = vmatpush1.msra.mxu0 0.0
    %83 = vmatprep.subr.mxu0 0.0
    %84 = vmatpush1.msra.mxu0 0.0
    %85 = vmatprep.subr.mxu0 0.0
    %86 = vmatpush1.msra.mxu0 0.0
    %87 = vmatprep.subr.mxu0 0.0
    %88 = vmatpush1.msra.mxu0 0.0
    %89 = vmatprep.subr.mxu0 0.0
    %90 = vmatpush1.msra.mxu0 0.0
    %91 = vmatprep.subr.mxu0 0.0
    %92 = vmatpush1.msra.mxu0 0.0
    %93 = vmatprep.subr.mxu0 0.0
    %94 = vmatpush1.msra.mxu0 0.0
    %95 = vmatprep.subr.mxu0 0.0
    %96 = vmatpush1.msra.mxu0 0.0
    %97 = vmatprep.subr.mxu0 0.0
    %98 = vmatpush1.msra.mxu0 0.0
    %99 = vmatprep.subr.mxu0 0.0
    %100 = vmatpush1.msra.mxu0 0.0
    %101 = vmatprep.subr.mxu0 0.0
    %102 = vmatpush1.msra.mxu0 0.0
    %103 = vmatprep.subr.mxu0 0.0
    %104 = vmatpush1.msra.mxu0 0.0
    %105 = vmatprep.subr.mxu0 0.0
    %106 = vmatpush1.msra.mxu0 0.0
    %107 = vmatprep.subr.mxu0 0.0
    %108 = vmatpush1.msra.mxu0 0.0
    %109 = vmatprep.subr.mxu0 0.0
    %110 = vmatpush1.msra.mxu0 0.0
    %111 = vmatprep.subr.mxu0 0.0
    %112 = vmatpush1.msra.mxu0 0.0
    %113 = vmatprep.subr.mxu0 0.0
    %114 = vmatpush1.msra.mxu0 0.0
    %115 = vmatprep.subr.mxu0 0.0
    %116 = vmatpush1.msra.mxu0 0.0
    %117 = vmatprep.subr.mxu0 0.0
    %118 = vmatpush1.msra.mxu0 0.0
    %119 = vmatprep.subr.mxu0 0.0
    %120 = vmatpush1.msra.mxu0 0.0
    %121 = vmatprep.subr.mxu0 0.0
    %122 = vmatpush1.msra.mxu0 0.0
    %123 = vmatprep.subr.mxu0 0.0
    %124 = vmatpush1.msra.mxu0 0.0
    %125 = vmatprep.mubr.f32.mxu0 0.0
    %126 = vmatmul.mubr.f32.gmra.mrb[0].mxu0 %v46
    %v127 = vpop.f32.mrb[0].mxu0
    %v128 = vadd.f32 %v27, %v127
    %v129 = vpop.f32.mrb[0].mxu0
    %130 = vmatprep.mubr.f32.mxu0 0.0
    %131 = vmatmul.mubr.f32.gmra.mrb[0].mxu0 %v49
    %v132 = vpop.f32.mrb[0].mxu0
    %v133 = vadd.f32 %v32, %v132
    %v134 = vpop.f32.mrb[0].mxu0
    %135 = vmatprep.mubr.f32.mxu0 0.0
    %136 = vmatmul.mubr.f32.gmra.mrb[0].mxu0 %v52
    %v137 = vpop.f32.mrb[0].mxu0
    %v138 = vadd.f32 %v37, %v137
    %v139 = vpop.f32.mrb[0].mxu0
    %140 = vmatprep.mubr.f32.mxu0 0.0
    %141 = vmatmul.mubr.f32.gmra.mrb[0].mxu0 %v55
    %v142 = vpop.f32.mrb[0].mxu0
    %v143 = vadd.f32 %v42, %v142
    %v144 = vpop.f32.mrb[0].mxu0
    %145 = vdwg.mxu0
    %v146 = vmax.f32 %v128, 0.0
    %v147 = vmax.f32 %v133, 0.0
    %v148 = vmax.f32 %v138, 0.0
    %v149 = vmax.f32 %v143, 0.0
    %v150 = vld [vmem:[%s1 + $0x20] sm:$0xff]
    %v151 = vld [vmem:[%s1 + $0x28] sm:$0xff]
    %v152 = vld [vmem:[%s1 + $0x30] sm:$0xff]
    %v153 = vld [vmem:[%s1 + $0x38] sm:$0xff]
    %v154 = vld [vmem:[%s2 + $0x20] sm:$0xff]
    %v155 = vld [vmem:[%s2 + $0x28] sm:$0xff]
    %v156 = vld [vmem:[%s2 + $0x30] sm:$0xff]
    %v157 = vld [vmem:[%s2 + $0x38] sm:$0xff]
    %159 = vset.pattern.permute.xlu0 0
    %160 = vperm.xlu0 %159, %v154
    %v161 = vpop.permute.xlu0 %160
    %164 = vset.pattern.permute.xlu0 0
    %165 = vperm.xlu0 %164, %v155
    %v166 = vpop.permute.xlu0 %165
    %169 = vset.pattern.permute.xlu0 0
    %170 = vperm.xlu0 %169, %v156
    %v171 = vpop.permute.xlu0 %170
    %174 = vset.pattern.permute.xlu0 0
    %175 = vperm.xlu0 %174, %v157
    %v176 = vpop.permute.xlu0 %175
    %vm178 = vcmask 261120
    %v180 = vsel %vm178, %v150, 0
    %v183 = vsel %vm178, %v151, 0
    %v186 = vsel %vm178, %v152, 0
    %v189 = vsel %vm178, %v153, 0
    %191 = vmatprep.subr.mxu0 0.0
    %192 = vmatpush1.msra.mxu0 %v146
    %193 = vmatprep.subr.mxu0 0.0
    %194 = vmatpush1.msra.mxu0 %v147
    %195 = vmatprep.subr.mxu0 0.0
    %196 = vmatpush1.msra.mxu0 %v148
    %197 = vmatprep.subr.mxu0 0.0
    %198 = vmatpush1.msra.mxu0 %v149
    %199 = vmatprep.subr.mxu0 0.0
    %200 = vmatpush1.msra.mxu0 0.0
    %201 = vmatprep.subr.mxu0 0.0
    %202 = vmatpush1.msra.mxu0 0.0
    %203 = vmatprep.subr.mxu0 0.0
    %204 = vmatpush1.msra.mxu0 0.0
    %205 = vmatprep.subr.mxu0 0.0
    %206 = vmatpush1.msra.mxu0 0.0
    %207 = vmatprep.subr.mxu0 0.0
    %208 = vmatpush1.msra.mxu0 0.0
    %209 = vmatprep.subr.mxu0 0.0
    %210 = vmatpush1.msra.mxu0 0.0
    %211 = vmatprep.subr.mxu0 0.0
    %212 = vmatpush1.msra.mxu0 0.0
    %213 = vmatprep.subr.mxu0 0.0
    %214 = vmatpush1.msra.mxu0 0.0
    %215 = vmatprep.subr.mxu0 0.0
    %216 = vmatpush1.msra.mxu0 0.0
    %217 = vmatprep.subr.mxu0 0.0
    %218 = vmatpush1.msra.mxu0 0.0
    %219 = vmatprep.subr.mxu0 0.0
    %220 = vmatpush1.msra.mxu0 0.0
    %221 = vmatprep.subr.mxu0 0.0
    %222 = vmatpush1.msra.mxu0 0.0
    %223 = vmatprep.subr.mxu0 0.0
    %224 = vmatpush1.msra.mxu0 0.0
    %225 = vmatprep.subr.mxu0 0.0
    %226 = vmatpush1.msra.mxu0 0.0
    %227 = vmatprep.subr.mxu0 0.0
    %228 = vmatpush1.msra.mxu0 0.0
    %229 = vmatprep.subr.mxu0 0.0
    %230 = vmatpush1.msra.mxu0 0.0
    %231 = vmatprep.subr.mxu0 0.0
    %232 = vmatpush1.msra.mxu0 0.0
    %233 = vmatprep.subr.mxu0 0.0
    %234 = vmatpush1.msra.mxu0 0.0
    %235 = vmatprep.subr.mxu0 0.0
    %236 = vmatpush1.msra.mxu0 0.0
    %237 = vmatprep.subr.mxu0 0.0
    %238 = vmatpush1.msra.mxu0 0.0
    %239 = vmatprep.subr.mxu0 0.0
    %240 = vmatpush1.msra.mxu0 0.0
    %241 = vmatprep.subr.mxu0 0.0
    %242 = vmatpush1.msra.mxu0 0.0
    %243 = vmatprep.subr.mxu0 0.0
    %244 = vmatpush1.msra.mxu0 0.0
    %245 = vmatprep.subr.mxu0 0.0
    %246 = vmatpush1.msra.mxu0 0.0
    %247 = vmatprep.subr.mxu0 0.0
    %248 = vmatpush1.msra.mxu0 0.0
    %249 = vmatprep.subr.mxu0 0.0
    %250 = vmatpush1.msra.mxu0 0.0
    %251 = vmatprep.subr.mxu0 0.0
    %252 = vmatpush1.msra.mxu0 0.0
    %253 = vmatprep.subr.mxu0 0.0
    %254 = vmatpush1.msra.mxu0 0.0
    %255 = vmatprep.mubr.f32.mxu0 0.0
    %256 = vmatmul.mubr.f32.gmra.mrb[0].mxu0 %v180
    %v257 = vpop.f32.mrb[0].mxu0
    %v258 = vadd.f32 %v161, %v257
    %v259 = vpop.f32.mrb[0].mxu0
    %260 = vmatprep.mubr.f32.mxu0 0.0
    %261 = vmatmul.mubr.f32.gmra.mrb[0].mxu0 %v183
    %v262 = vpop.f32.mrb[0].mxu0
    %v263 = vadd.f32 %v166, %v262
    %v264 = vpop.f32.mrb[0].mxu0
    %265 = vmatprep.mubr.f32.mxu0 0.0
    %266 = vmatmul.mubr.f32.gmra.mrb[0].mxu0 %v186
    %v267 = vpop.f32.mrb[0].mxu0
    %v268 = vadd.f32 %v171, %v267
    %v269 = vpop.f32.mrb[0].mxu0
    %270 = vmatprep.mubr.f32.mxu0 0.0
    %271 = vmatmul.mubr.f32.gmra.mrb[0].mxu0 %v189
    %v272 = vpop.f32.mrb[0].mxu0
    %v273 = vadd.f32 %v176, %v272
    %v274 = vpop.f32.mrb[0].mxu0
    %275 = vdwg.mxu0
    %v276 = vmax.f32 %v258, 0.0
    %v277 = vmax.f32 %v263, 0.0
    %v278 = vmax.f32 %v268, 0.0
    %v279 = vmax.f32 %v273, 0.0
    %v280 = vld [vmem:[%s1 + $0x40] sm:$0x1]
    %v281 = vld [vmem:[%s2 + $0x40] sm:$0x1]
    %283 = vset.pattern.permute.xlu0 0
    %284 = vperm.xlu0 %283, %v281
    %v285 = vpop.permute.xlu0 %284
    %v288 = vsel %vm178, %v280, 0
    %290 = vmatprep.subr.mxu0 0.0
    %291 = vmatpush1.msra.mxu0 %v276
    %292 = vmatprep.subr.mxu0 0.0
    %293 = vmatpush1.msra.mxu0 %v277
    %294 = vmatprep.subr.mxu0 0.0
    %295 = vmatpush1.msra.mxu0 %v278
    %296 = vmatprep.subr.mxu0 0.0
    %297 = vmatpush1.msra.mxu0 %v279
    %298 = vmatprep.subr.mxu0 0.0
    %299 = vmatpush1.msra.mxu0 0.0
    %300 = vmatprep.subr.mxu0 0.0
    %301 = vmatpush1.msra.mxu0 0.0
    %302 = vmatprep.subr.mxu0 0.0
    %303 = vmatpush1.msra.mxu0 0.0
    %304 = vmatprep.subr.mxu0 0.0
    %305 = vmatpush1.msra.mxu0 0.0
    %306 = vmatprep.subr.mxu0 0.0
    %307 = vmatpush1.msra.mxu0 0.0
    %308 = vmatprep.subr.mxu0 0.0
    %309 = vmatpush1.msra.mxu0 0.0
    %310 = vmatprep.subr.mxu0 0.0
    %311 = vmatpush1.msra.mxu0 0.0
    %312 = vmatprep.subr.mxu0 0.0
    %313 = vmatpush1.msra.mxu0 0.0
    %314 = vmatprep.subr.mxu0 0.0
    %315 = vmatpush1.msra.mxu0 0.0
    %316 = vmatprep.subr.mxu0 0.0
    %317 = vmatpush1.msra.mxu0 0.0
    %318 = vmatprep.subr.mxu0 0.0
    %319 = vmatpush1.msra.mxu0 0.0
    %320 = vmatprep.subr.mxu0 0.0
    %321 = vmatpush1.msra.mxu0 0.0
    %322 = vmatprep.subr.mxu0 0.0
    %323 = vmatpush1.msra.mxu0 0.0
    %324 = vmatprep.subr.mxu0 0.0
    %325 = vmatpush1.msra.mxu0 0.0
    %326 = vmatprep.subr.mxu0 0.0
    %327 = vmatpush1.msra.mxu0 0.0
    %328 = vmatprep.subr.mxu0 0.0
    %329 = vmatpush1.msra.mxu0 0.0
    %330 = vmatprep.subr.mxu0 0.0
    %331 = vmatpush1.msra.mxu0 0.0
    %332 = vmatprep.subr.mxu0 0.0
    %333 = vmatpush1.msra.mxu0 0.0
    %334 = vmatprep.subr.mxu0 0.0
    %335 = vmatpush1.msra.mxu0 0.0
    %336 = vmatprep.subr.mxu0 0.0
    %337 = vmatpush1.msra.mxu0 0.0
    %338 = vmatprep.subr.mxu0 0.0
    %339 = vmatpush1.msra.mxu0 0.0
    %340 = vmatprep.subr.mxu0 0.0
    %341 = vmatpush1.msra.mxu0 0.0
    %342 = vmatprep.subr.mxu0 0.0
    %343 = vmatpush1.msra.mxu0 0.0
    %344 = vmatprep.subr.mxu0 0.0
    %345 = vmatpush1.msra.mxu0 0.0
    %346 = vmatprep.subr.mxu0 0.0
    %347 = vmatpush1.msra.mxu0 0.0
    %348 = vmatprep.subr.mxu0 0.0
    %349 = vmatpush1.msra.mxu0 0.0
    %350 = vmatprep.subr.mxu0 0.0
    %351 = vmatpush1.msra.mxu0 0.0
    %352 = vmatprep.subr.mxu0 0.0
    %353 = vmatpush1.msra.mxu0 0.0
    %354 = vmatprep.mubr.f32.mxu0 0.0
    %355 = vmatmul.mubr.f32.gmra.mrb[0].mxu0 %v288
    %v356 = vpop.f32.mrb[0].mxu0
    %v357 = vadd.f32 %v285, %v356
    %v358 = vpop.f32.mrb[0].mxu0
    %359 = vdwg.mxu0
    %360 = vst [vmem:[#allocation2] sm:$0x1] %v357
    // Predicated region
    $region14: #{tpu_custom_call.1} parent=1 // pred_check
      _
    $region15: #{tpu_custom_call.1} parent=1 // pred_check_branch
      %362 = sbr.rel (0) target = $region17
    $region16: #{tpu_custom_call.1} parent=1 // pred_region
      %s364 = ssub.s32 16, 16
      %365 = vsyncadd [#allocation3], %s364
      %s367 = sshll.u32 [#allocation2], 4
      %s368 = int_to_ptr.vmem [resolvable:$true] %s367
      %370 = dma.vmem_to_hbm [thread:$0]  %s368, 16, %s3, [#allocation3]
    $region17: #{tpu_custom_call.1} parent=1 // pred_fallthru
      _
    // Predicated region
    $region18: #{tpu_custom_call.1} parent=1 // pred_check
      _
    $region19: #{tpu_custom_call.1} parent=1 // pred_check_branch
      %372 = sbr.rel (0) target = $region21
    $region20: #{tpu_custom_call.1} parent=1 // pred_region
      %373 = dma.done [#allocation3], 16
    $region21: #{tpu_custom_call.1} parent=1 // pred_fallthru
      _
    %374 = vsyncpa [#allocation3], 1

</llo_original>
